<compile_context>
chip_gen: v7x
topology: tpu7x:2x2x1
jax: 0.10.0
libtpu: 0.0.40
codegen_flags: <defaults>
</compile_context>

<pallas_src>
import jax
import jax.numpy as jnp
from jax.experimental import pallas as pl
from jax.experimental.pallas import tpu as pltpu

_LANES = 128  # vreg lane width


def _copy_kernel(x_ref, o_ref):
    # Identity copy of one lane-dense tile through VMEM.
    o_ref[...] = x_ref[...]


def _pick_lane_width(n):
    """Largest multiple of 128 (capped at 2048) that divides n, else None."""
    for lanes in (2048, 1024, 512, 256, _LANES):
        if n % lanes == 0:
            return lanes
    return None


def expand(x, axis=-1, target_block_bytes=4 * 1024 * 1024):
    """Pallas equivalent of torch `x.unsqueeze(axis)`."""
    n = x.size
    itemsize = jnp.dtype(x.dtype).itemsize
    lanes = _pick_lane_width(n)

    if lanes is None:
        # Total element count not a multiple of 128: single-block fallback
        # (only hit for tiny / odd shapes; block == full array so the (8,128)
        # divisibility rule does not apply).
        # TODO(synk): pad-and-slice path for large sizes not divisible by 128.
        copied = pl.pallas_call(
            _copy_kernel,
            out_shape=jax.ShapeDtypeStruct(x.shape, x.dtype),
            in_specs=[pl.BlockSpec(x.shape, lambda: (0,) * x.ndim)],
            out_specs=pl.BlockSpec(x.shape, lambda: (0,) * x.ndim),
            input_output_aliases={0: 0},
        )(x)
        return jnp.expand_dims(copied, axis)

    rows = n // lanes
    # dtype-dependent sublane multiple: 8 (f32) / 16 (bf16) / 32 (int8, fp8).
    sub = max(8, 32 // itemsize)
    tile_rows = (target_block_bytes // (lanes * itemsize)) // sub * sub
    tile_rows = int(max(sub, tile_rows))
    tile_rows = min(tile_rows, rows)  # full extent if the slab is small

    grid = (pl.cdiv(rows, tile_rows),)
    tile_bytes = tile_rows * lanes * itemsize
    # in + out, double-buffered, plus headroom; stays under v7x's 64 MiB VMEM.
    vmem_limit = min(64 * 1024 * 1024, max(8 * tile_bytes, 32 * 1024 * 1024))

    x2d = x.reshape(rows, lanes)  # lane-dense 2-D slab (metadata reshape)
    copied = pl.pallas_call(
        _copy_kernel,
        out_shape=jax.ShapeDtypeStruct((rows, lanes), x.dtype),
        grid=grid,
        in_specs=[pl.BlockSpec((tile_rows, lanes), lambda i: (i, 0))],
        out_specs=pl.BlockSpec((tile_rows, lanes), lambda i: (i, 0)),
        input_output_aliases={0: 0},
        compiler_params=pltpu.CompilerParams(
            dimension_semantics=("parallel",),
            vmem_limit_bytes=vmem_limit,
        ),
    )(x2d)

    # The unsqueeze itself is shape-only: applied here at zero cost.
    return jnp.expand_dims(copied.reshape(x.shape), axis)


if __name__ == "__main__":
    key = jax.random.PRNGKey(0)

    # TIDNet-style EEG input (batch=2, channels=4, samples=16); Expand adds a
    # trailing singleton spatial dim: (B, C, T) -> (B, C, T, 1).
    x = jax.random.normal(key, (2, 4, 16), dtype=jnp.float32)
    ref = jnp.expand_dims(x, -1)
    out = jax.block_until_ready(expand(x, axis=-1))
    assert out.shape == (2, 4, 16, 1), out.shape
    assert out.dtype == x.dtype
    assert jnp.array_equal(out, ref)

    # Slightly larger input with a small forced tile so the multi-block,
    # lane-dense grid path is exercised as well (still tiny: 32*8*128 f32).
    x2 = jax.random.normal(jax.random.PRNGKey(1), (32, 8, 128), dtype=jnp.float32)
    ref2 = jnp.expand_dims(x2, 1)
    out2 = jax.block_until_ready(expand(x2, axis=1, target_block_bytes=64 * 1024))
    assert out2.shape == (32, 1, 8, 128), out2.shape
    assert jnp.array_equal(out2, ref2)

    print("KERNEL_OK")
</pallas_src>

<mosaic_0001>
module attributes {stable_mosaic.version = 11 : i64} {
  func.func @_copy_kernel(%arg0: i32, %arg1: memref<1x128xf32, #tpu.memory_space<vmem>>, %arg2: memref<1x128xf32, #tpu.memory_space<vmem>>) attributes {dimension_semantics = [#tpu.dimension_semantics<parallel>], iteration_bounds = array<i64: 1>, scalar_prefetch = 0 : i64, scratch_operands = 0 : i64, tpu.core_type = #tpu.core_type<tc>, window_params = [{transform_indices = @transform_0, window_bounds = array<i64: 1, 128>}, {transform_indices = @transform_1, window_bounds = array<i64: 1, 128>}]} {
    %c0 = arith.constant 0 : index
    %c0_0 = arith.constant 0 : index
    %0 = vector.load %arg1[%c0, %c0_0] : memref<1x128xf32, #tpu.memory_space<vmem>>, vector<1x128xf32>
    %c0_1 = arith.constant 0 : index
    %c0_2 = arith.constant 0 : index
    %1 = vector.load %arg2[%c0_1, %c0_2] : memref<1x128xf32, #tpu.memory_space<vmem>>, vector<1x128xf32>
    tpu.vector_store %arg2[%c0_1, %c0_2], %0 {strides = array<i32>} : memref<1x128xf32, #tpu.memory_space<vmem>>, vector<1x128xf32>,
    return
  }
  func.func @transform_0(%arg0: i32) -> (i32, i32) {
    %c0_i32 = arith.constant 0 : i32
    %c0_i32_0 = arith.constant 0 : i32
    return %arg0, %c0_i32 : i32, i32
  }
  func.func @transform_1(%arg0: i32) -> (i32, i32) {
    %c0_i32 = arith.constant 0 : i32
    %c0_i32_0 = arith.constant 0 : i32
    return %arg0, %c0_i32 : i32, i32
  }
}

</mosaic_0001>

<llo_original>
// kernel: tpu_custom_call.1
$region0: #{tpu_custom_call.1}
  #allocation0 [shape = 'u32[]', space=smem, size = 0x4, offset = 0x4, fixed_abs, tag = 'smem constant byte address 0x4 - core index']
  #allocation1 [shape = 'u32[144,128]{1,0:T(1,128)}', space=vmem, size = 0x12000, scoped, tag = 'internal scratch']
  %s0 = inlined_call_operand.hbm [shape: f32[1,128], index: 0, kind: input, shape index: {}, may-alias: {0,1}]
  %s1 = inlined_call_operand.hbm [shape: f32[1,128], index: 1, kind: output, shape index: {}, may-alias: {0,1}]
  %s2 = sld [smem:[#allocation0]]
  $region18: #{tpu_custom_call.1} parent=0
    _
  %s4 = ssub.s32 1, %s2
  %s5 = scalar_select 0, %s4, %s2
  $region1: #{tpu_custom_call.1} parent=0
    #allocation2 [shape = 'u8[512]{0}', space=vmem, size = 0x400, scoped, tag = 'input window, operand 0, single buffered']
    #allocation3 [shape = 's32[1]{0}', space=sflag, size = 0x4, scoped, tag = 'scoped memory for tpu_custom_call.1']
    #allocation4 [shape = 's32[1]{0}', space=sflag, size = 0x4, scoped, tag = 'scoped memory for tpu_custom_call.1']
    #allocation5 [shape = 'u8[512]{0}', space=vmem, size = 0x400, scoped, tag = 'output window, operand 0, single buffered']
    %6 = vsyncpa [#allocation3], 0
    %7 = vsyncpa [#allocation4], 0
    // Predicated region
    $region2: #{tpu_custom_call.1} parent=1 // pred_check
      _
    $region3: #{tpu_custom_call.1} parent=1 // pred_check_branch
      %9 = sbr.rel (0) target = $region5
    $region4: #{tpu_custom_call.1} parent=1 // pred_region
      %s11 = ssub.s32 16, 16
      %12 = vsyncadd [#allocation3], %s11
      %s14 = sshll.u32 [#allocation2], 4
      %s15 = int_to_ptr.vmem [resolvable:$true] %s14
      %17 = dma.hbm_to_vmem [thread:$0]  %s0, 16, %s15, [#allocation3]
    $region5: #{tpu_custom_call.1} parent=1 // pred_fallthru
      _
    // Predicated region
    $region6: #{tpu_custom_call.1} parent=1 // pred_check
      _
    $region7: #{tpu_custom_call.1} parent=1 // pred_check_branch
      %19 = sbr.rel (0) target = $region9
    $region8: #{tpu_custom_call.1} parent=1 // pred_region
      %20 = dma.done [#allocation3], 16
    $region9: #{tpu_custom_call.1} parent=1 // pred_fallthru
      _
    %v21 = vld [vmem:[#allocation2] sm:$0x1]
    %22 = vst [vmem:[#allocation5] sm:$0x1] %v21
    // Predicated region
    $region10: #{tpu_custom_call.1} parent=1 // pred_check
      _
    $region11: #{tpu_custom_call.1} parent=1 // pred_check_branch
      %24 = sbr.rel (0) target = $region13
    $region12: #{tpu_custom_call.1} parent=1 // pred_region
      %s26 = ssub.s32 16, 16
      %27 = vsyncadd [#allocation4], %s26
      %s29 = sshll.u32 [#allocation5], 4
      %s30 = int_to_ptr.vmem [resolvable:$true] %s29
      %32 = dma.vmem_to_hbm [thread:$0]  %s30, 16, %s1, [#allocation4]
    $region13: #{tpu_custom_call.1} parent=1 // pred_fallthru
      _
    // Predicated region
    $region14: #{tpu_custom_call.1} parent=1 // pred_check
      _
    $region15: #{tpu_custom_call.1} parent=1 // pred_check_branch
      %34 = sbr.rel (0) target = $region17
    $region16: #{tpu_custom_call.1} parent=1 // pred_region
      %35 = dma.done [#allocation4], 16
    $region17: #{tpu_custom_call.1} parent=1 // pred_fallthru
      _
    %36 = vsyncpa [#allocation3], 1
    %37 = vsyncpa [#allocation4], 1

</llo_original>
